<compile_context>
chip_gen: v6e
topology: v6e:2x2x1
jax: 0.10.0
libtpu: 0.0.40
codegen_flags: <defaults>
</compile_context>

<pallas_src>
import jax
import jax.numpy as jnp
from jax.experimental import pallas as pl
from jax.experimental.pallas import tpu as pltpu


def _round_up(x: int, m: int) -> int:
    return (x + m - 1) // m * m


# dtypes the kernel casts itself; anything else is pre-cast to f32 wrapper-side.
_KERNEL_DTYPES = {"float32", "bfloat16", "int32", "uint32"}


def _make_kernel(num_feats: int):
    """Kernel: refs = (feat_0, ..., feat_{F-1}, out).

    feat_f : (tbq, 128) VMEM tile of feature f   (128-wide rows of the batch)
    out    : (F, tbq, 128) float32 VMEM tile     (== lane-dense [F, tb] slab)
    """

    def kernel(*refs):
        out_ref = refs[-1]
        for f in range(num_feats):
            out_ref[f, :, :] = refs[f][...].astype(jnp.float32)

    return kernel


def dense_feat_cat(feat: dict, *, layout: str = "BF",
                   min_pallas_batch: int = 256,
                   vmem_budget_bytes: int = 16 << 20) -> jax.Array:
    """JAX/Pallas equivalent of DenseFeatCatLayer.forward.

    :param feat: dict[name -> Array[B]] (insertion order = output column order)
    :param layout: "BF" -> [B, F] float32 (module contract, default);
                   "FB" -> lane-dense [F, B] float32 (no post-kernel transpose,
                   preferred when the consumer can take the transposed slab).
    """
    assert layout in ("BF", "FB")
    names = list(feat.keys())
    assert len(names) > 0, "empty feature dict"
    xs = [jnp.asarray(feat[n]) for n in names]
    F = len(xs)
    B = int(xs[0].shape[0])
    assert B > 0, "empty batch"
    assert all(x.ndim == 1 and x.shape[0] == B for x in xs), \
        "all features must be 1-D with the same batch size"

    # Hoist the float32 cast for dtypes Mosaic can't ingest (module casts anyway).
    xs = [x if x.dtype.name in _KERNEL_DTYPES else x.astype(jnp.float32)
          for x in xs]

    # ---- small-input gate: pure layout op, let XLA fuse it -----------------
    # (re-tuned threshold: with the stack/pad passes gone the Pallas fixed
    #  cost is just one kernel launch, but tiny batches still aren't worth it)
    if B < min_pallas_batch:
        if layout == "FB":
            return jnp.stack([x.astype(jnp.float32) for x in xs], axis=0)
        return jnp.concatenate(
            [x.reshape(B, 1).astype(jnp.float32) for x in xs], axis=1)

    # ---- layout: [B] -> (Bq, 128) dense rows (free reshape; pad only to 128)
    B_pad = _round_up(B, 128)
    if B_pad != B:
        xs = [jnp.pad(x, (0, B_pad - B)) for x in xs]   # <1% waste, rare
    Bq = B_pad // 128
    xs2d = [x.reshape(Bq, 128) for x in xs]

    # ---- batch tile (in rows of 128) from the VMEM budget ------------------
    # multiple of 32 rows so bf16/int8 sublane packing is always respected;
    # capped so the parallel grid keeps >= 2 steps (v7x 2-TC sharding).
    in_bytes_row = 128 * sum(x.dtype.itemsize for x in xs2d)
    out_bytes_row = 128 * 4 * F
    row_bytes = in_bytes_row + out_bytes_row            # payload per 128 batches
    tbq = max(32, (vmem_budget_bytes // (2 * row_bytes)) // 32 * 32)
    if Bq <= 32:
        tbq = Bq                                        # full dim (always legal)
    else:
        half = _round_up(-(-Bq // 2), 32)               # keep >= 2 grid steps
        tbq = min(tbq, half, Bq)
    grid = (pl.cdiv(Bq, tbq),)

    vmem_limit = max(32 << 20, min(2 * tbq * row_bytes + (8 << 20), 64 << 20))

    in_specs = [pl.BlockSpec((tbq, 128), lambda i: (i, 0)) for _ in xs2d]
    out_spec = pl.BlockSpec((F, tbq, 128), lambda i: (0, i, 0))

    slab = pl.pallas_call(
        _make_kernel(F),
        out_shape=jax.ShapeDtypeStruct((F, Bq, 128), jnp.float32),
        grid=grid,
        in_specs=in_specs,
        out_specs=out_spec,
        compiler_params=pltpu.CompilerParams(
            dimension_semantics=("parallel",),
            vmem_limit_bytes=int(vmem_limit)),
        cost_estimate=pl.CostEstimate(
            flops=0, transcendentals=0,
            bytes_accessed=int(Bq * row_bytes)),
    )(*xs2d)

    fb = slab.reshape(F, B_pad)                         # free reshape
    if B_pad != B:
        fb = fb[:, :B]
    if layout == "FB":
        return fb                                       # lane-dense fast path
    # Module contract [B, F]: single remaining XLA transpose (see TODO above).
    return fb.T


def _make_feat(keys, B):
    return {
        "age":    jax.random.normal(keys[0], (B,), dtype=jnp.float32) * 10.0 + 30.0,
        "price":  jax.random.uniform(keys[1], (B,), dtype=jnp.float32) * 100.0,
        "clicks": jax.random.randint(keys[2], (B,), 0, 50).astype(jnp.int32),
        "score":  jax.random.normal(keys[3], (B,), dtype=jnp.bfloat16),
        "ctr":    jax.random.uniform(keys[4], (B,), dtype=jnp.float32),
        "views":  jax.random.randint(keys[5], (B,), 0, 1000).astype(jnp.int32),
    }


def _ref_concat(feat):
    B = next(iter(feat.values())).shape[0]
    return jnp.concatenate(
        [x.reshape(B, 1).astype(jnp.float32) for x in feat.values()], axis=1)


if __name__ == "__main__":
    key = jax.random.PRNGKey(0)
    ks = jax.random.split(key, 12)

    # --- main case: Pallas path, B multiple of 128, single block ------------
    B = 1024
    feat = _make_feat(ks[:6], B)
    F = len(feat)
    ref = _ref_concat(feat)

    out = jax.block_until_ready(dense_feat_cat(feat))            # [B, F]
    assert out.shape == (B, F), out.shape
    assert out.dtype == jnp.float32, out.dtype
    assert jnp.allclose(out, ref), "BF mismatch vs reference"

    out_fb = jax.block_until_ready(dense_feat_cat(feat, layout="FB"))  # [F, B]
    assert out_fb.shape == (F, B), out_fb.shape
    assert jnp.allclose(out_fb, ref.T), "FB mismatch vs reference"

    # --- B not a multiple of 128 (pads only the 128-remainder) --------------
    B2 = 1000
    feat2 = {k: v[:B2] for k, v in feat.items()}
    out2 = jax.block_until_ready(dense_feat_cat(feat2))
    assert out2.shape == (B2, F)
    assert jnp.allclose(out2, _ref_concat(feat2)), "non-128 batch mismatch"

    # --- multi-step parallel grid with a clipped (non-dividing) last tile ---
    B3 = 128 * 70   # Bq=70, tbq=64 -> grid=(2,), last block clipped to 6 rows
    feat3 = _make_feat(ks[6:12], B3)
    out3 = jax.block_until_ready(dense_feat_cat(feat3))
    assert out3.shape == (B3, F)
    assert jnp.allclose(out3, _ref_concat(feat3)), "clipped-tile mismatch"

    # --- small-batch fallback (pure XLA, no kernel launch) ------------------
    feat_small = {k: v[:8] for k, v in feat.items()}
    out_small = jax.block_until_ready(dense_feat_cat(feat_small))
    assert jnp.allclose(out_small, _ref_concat(feat_small)), "fallback mismatch"

    print("KERNEL_OK")
</pallas_src>

<mosaic_0001>
module attributes {stable_mosaic.version = 11 : i64} {
  func.func @kernel(%arg0: i32, %arg1: memref<8x128xf32, #tpu.memory_space<vmem>>, %arg2: memref<8x128xf32, #tpu.memory_space<vmem>>, %arg3: memref<8x128xi32, #tpu.memory_space<vmem>>, %arg4: memref<8x128xbf16, #tpu.memory_space<vmem>>, %arg5: memref<8x128xf32, #tpu.memory_space<vmem>>, %arg6: memref<8x128xi32, #tpu.memory_space<vmem>>, %arg7: memref<6x8x128xf32, #tpu.memory_space<vmem>>) attributes {dimension_semantics = [#tpu.dimension_semantics<parallel>], iteration_bounds = array<i64: 1>, scalar_prefetch = 0 : i64, scratch_operands = 0 : i64, tpu.core_type = #tpu.core_type<tc>, window_params = [{transform_indices = @transform_0, window_bounds = array<i64: 8, 128>}, {transform_indices = @transform_1, window_bounds = array<i64: 8, 128>}, {transform_indices = @transform_2, window_bounds = array<i64: 8, 128>}, {transform_indices = @transform_3, window_bounds = array<i64: 8, 128>}, {transform_indices = @transform_4, window_bounds = array<i64: 8, 128>}, {transform_indices = @transform_5, window_bounds = array<i64: 8, 128>}, {transform_indices = @transform_6, window_bounds = array<i64: 6, 8, 128>}]} {
    %c0 = arith.constant 0 : index
    %c0_0 = arith.constant 0 : index
    %0 = vector.load %arg1[%c0, %c0_0] : memref<8x128xf32, #tpu.memory_space<vmem>>, vector<8x128xf32>
    %c0_1 = arith.constant 0 : index
    %c0_2 = arith.constant 0 : index
    %c0_3 = arith.constant 0 : index
    %1 = vector.load %arg7[%c0_1, %c0_2, %c0_3] : memref<6x8x128xf32, #tpu.memory_space<vmem>>, vector<1x8x128xf32>
    %2 = vector.shape_cast %1 : vector<1x8x128xf32> to vector<8x128xf32>
    %3 = vector.shape_cast %0 : vector<8x128xf32> to vector<1x8x128xf32>
    tpu.vector_store %arg7[%c0_1, %c0_2, %c0_3], %3 {strides = array<i32>} : memref<6x8x128xf32, #tpu.memory_space<vmem>>, vector<1x8x128xf32>,
    %c0_4 = arith.constant 0 : index
    %c0_5 = arith.constant 0 : index
    %4 = vector.load %arg2[%c0_4, %c0_5] : memref<8x128xf32, #tpu.memory_space<vmem>>, vector<8x128xf32>
    %c1 = arith.constant 1 : index
    %c0_6 = arith.constant 0 : index
    %c0_7 = arith.constant 0 : index
    %5 = vector.load %arg7[%c1, %c0_6, %c0_7] : memref<6x8x128xf32, #tpu.memory_space<vmem>>, vector<1x8x128xf32>
    %6 = vector.shape_cast %5 : vector<1x8x128xf32> to vector<8x128xf32>
    %7 = vector.shape_cast %4 : vector<8x128xf32> to vector<1x8x128xf32>
    tpu.vector_store %arg7[%c1, %c0_6, %c0_7], %7 {strides = array<i32>} : memref<6x8x128xf32, #tpu.memory_space<vmem>>, vector<1x8x128xf32>,
    %c0_8 = arith.constant 0 : index
    %c0_9 = arith.constant 0 : index
    %8 = vector.load %arg3[%c0_8, %c0_9] : memref<8x128xi32, #tpu.memory_space<vmem>>, vector<8x128xi32>
    %9 = arith.sitofp %8 : vector<8x128xi32> to vector<8x128xf32>
    %c2 = arith.constant 2 : index
    %c0_10 = arith.constant 0 : index
    %c0_11 = arith.constant 0 : index
    %10 = vector.load %arg7[%c2, %c0_10, %c0_11] : memref<6x8x128xf32, #tpu.memory_space<vmem>>, vector<1x8x128xf32>
    %11 = vector.shape_cast %10 : vector<1x8x128xf32> to vector<8x128xf32>
    %12 = vector.shape_cast %9 : vector<8x128xf32> to vector<1x8x128xf32>
    tpu.vector_store %arg7[%c2, %c0_10, %c0_11], %12 {strides = array<i32>} : memref<6x8x128xf32, #tpu.memory_space<vmem>>, vector<1x8x128xf32>,
    %c0_12 = arith.constant 0 : index
    %c0_13 = arith.constant 0 : index
    %13 = vector.load %arg4[%c0_12, %c0_13] : memref<8x128xbf16, #tpu.memory_space<vmem>>, vector<8x128xbf16>
    %14 = arith.extf %13 : vector<8x128xbf16> to vector<8x128xf32>
    %c3 = arith.constant 3 : index
    %c0_14 = arith.constant 0 : index
    %c0_15 = arith.constant 0 : index
    %15 = vector.load %arg7[%c3, %c0_14, %c0_15] : memref<6x8x128xf32, #tpu.memory_space<vmem>>, vector<1x8x128xf32>
    %16 = vector.shape_cast %15 : vector<1x8x128xf32> to vector<8x128xf32>
    %17 = vector.shape_cast %14 : vector<8x128xf32> to vector<1x8x128xf32>
    tpu.vector_store %arg7[%c3, %c0_14, %c0_15], %17 {strides = array<i32>} : memref<6x8x128xf32, #tpu.memory_space<vmem>>, vector<1x8x128xf32>,
    %c0_16 = arith.constant 0 : index
    %c0_17 = arith.constant 0 : index
    %18 = vector.load %arg5[%c0_16, %c0_17] : memref<8x128xf32, #tpu.memory_space<vmem>>, vector<8x128xf32>
    %c4 = arith.constant 4 : index
    %c0_18 = arith.constant 0 : index
    %c0_19 = arith.constant 0 : index
    %19 = vector.load %arg7[%c4, %c0_18, %c0_19] : memref<6x8x128xf32, #tpu.memory_space<vmem>>, vector<1x8x128xf32>
    %20 = vector.shape_cast %19 : vector<1x8x128xf32> to vector<8x128xf32>
    %21 = vector.shape_cast %18 : vector<8x128xf32> to vector<1x8x128xf32>
    tpu.vector_store %arg7[%c4, %c0_18, %c0_19], %21 {strides = array<i32>} : memref<6x8x128xf32, #tpu.memory_space<vmem>>, vector<1x8x128xf32>,
    %c0_20 = arith.constant 0 : index
    %c0_21 = arith.constant 0 : index
    %22 = vector.load %arg6[%c0_20, %c0_21] : memref<8x128xi32, #tpu.memory_space<vmem>>, vector<8x128xi32>
    %23 = arith.sitofp %22 : vector<8x128xi32> to vector<8x128xf32>
    %c5 = arith.constant 5 : index
    %c0_22 = arith.constant 0 : index
    %c0_23 = arith.constant 0 : index
    %24 = vector.load %arg7[%c5, %c0_22, %c0_23] : memref<6x8x128xf32, #tpu.memory_space<vmem>>, vector<1x8x128xf32>
    %25 = vector.shape_cast %24 : vector<1x8x128xf32> to vector<8x128xf32>
    %26 = vector.shape_cast %23 : vector<8x128xf32> to vector<1x8x128xf32>
    tpu.vector_store %arg7[%c5, %c0_22, %c0_23], %26 {strides = array<i32>} : memref<6x8x128xf32, #tpu.memory_space<vmem>>, vector<1x8x128xf32>,
    return
  }
  func.func @transform_0(%arg0: i32) -> (i32, i32) {
    %c0_i32 = arith.constant 0 : i32
    %c0_i32_0 = arith.constant 0 : i32
    return %arg0, %c0_i32 : i32, i32
  }
  func.func @transform_1(%arg0: i32) -> (i32, i32) {
    %c0_i32 = arith.constant 0 : i32
    %c0_i32_0 = arith.constant 0 : i32
    return %arg0, %c0_i32 : i32, i32
  }
  func.func @transform_2(%arg0: i32) -> (i32, i32) {
    %c0_i32 = arith.constant 0 : i32
    %c0_i32_0 = arith.constant 0 : i32
    return %arg0, %c0_i32 : i32, i32
  }
  func.func @transform_3(%arg0: i32) -> (i32, i32) {
    %c0_i32 = arith.constant 0 : i32
    %c0_i32_0 = arith.constant 0 : i32
    return %arg0, %c0_i32 : i32, i32
  }
  func.func @transform_4(%arg0: i32) -> (i32, i32) {
    %c0_i32 = arith.constant 0 : i32
    %c0_i32_0 = arith.constant 0 : i32
    return %arg0, %c0_i32 : i32, i32
  }
  func.func @transform_5(%arg0: i32) -> (i32, i32) {
    %c0_i32 = arith.constant 0 : i32
    %c0_i32_0 = arith.constant 0 : i32
    return %arg0, %c0_i32 : i32, i32
  }
  func.func @transform_6(%arg0: i32) -> (i32, i32, i32) {
    %c0_i32 = arith.constant 0 : i32
    %c0_i32_0 = arith.constant 0 : i32
    %c0_i32_1 = arith.constant 0 : i32
    return %c0_i32, %arg0, %c0_i32_0 : i32, i32, i32
  }
}

</mosaic_0001>

<llo_original>
// kernel: tpu_custom_call.1
$region0: #{tpu_custom_call.1}
  #allocation0 [shape = 'u32[]', space=smem, size = 0x4, offset = 0x4, fixed_abs, tag = 'smem constant byte address 0x4 - core index']
  #allocation1 [shape = 'u32[144,128]{1,0:T(1,128)}', space=vmem, size = 0x12000, scoped, tag = 'internal scratch']
  %s0 = inlined_call_operand.hbm [shape: f32[8,128], index: 0, kind: input, shape index: {}]
  %s1 = inlined_call_operand.hbm [shape: f32[8,128], index: 1, kind: input, shape index: {}]
  %s2 = inlined_call_operand.hbm [shape: s32[8,128], index: 2, kind: input, shape index: {}]
  %s3 = inlined_call_operand.hbm [shape: bf16[8,128], index: 3, kind: input, shape index: {}]
  %s4 = inlined_call_operand.hbm [shape: f32[8,128], index: 4, kind: input, shape index: {}]
  %s5 = inlined_call_operand.vmem [shape: s32[8,128], index: 5, kind: input, shape index: {}]
  %s6 = inlined_call_operand.hbm [shape: f32[6,8,128], index: 6, kind: output, shape index: {}]
  %s7 = sld [smem:[#allocation0]]
  $region54: #{tpu_custom_call.1} parent=0
    _
  %s9 = ssub.s32 1, %s7
  %s10 = scalar_select 0, %s9, %s7
  $region1: #{tpu_custom_call.1} parent=0
    #allocation2 [shape = 'u8[4096]{0}', space=vmem, size = 0x1000, scoped, tag = 'input window, operand 0, single buffered']
    #allocation3 [shape = 's32[1]{0}', space=sflag, size = 0x4, scoped, tag = 'scoped memory for tpu_custom_call.1']
    #allocation4 [shape = 's32[1]{0}', space=sflag, size = 0x4, scoped, tag = 'scoped memory for tpu_custom_call.1']
    #allocation5 [shape = 'u8[4096]{0}', space=vmem, size = 0x1000, scoped, tag = 'input window, operand 1, single buffered']
    #allocation6 [shape = 's32[1]{0}', space=sflag, size = 0x4, scoped, tag = 'scoped memory for tpu_custom_call.1']
    #allocation7 [shape = 'u8[4096]{0}', space=vmem, size = 0x1000, scoped, tag = 'input window, operand 2, single buffered']
    #allocation8 [shape = 'u8[2048]{0}', space=vmem, size = 0x800, scoped, tag = 'input window, operand 3, single buffered']
    #allocation9 [shape = 's32[1]{0}', space=sflag, size = 0x4, scoped, tag = 'scoped memory for tpu_custom_call.1']
    #allocation10 [shape = 'u8[4096]{0}', space=vmem, size = 0x1000, scoped, tag = 'input window, operand 4, single buffered']
    #allocation11 [shape = 'u8[24576]{0}', space=vmem, size = 0x6000, scoped, tag = 'output window, operand 0, single buffered']
    %11 = vsyncpa [#allocation3], 0
    %12 = vsyncpa [#allocation6], 0
    %13 = vsyncpa [#allocation9], 0
    %14 = vsyncpa [#allocation4], 0
    // Predicated region
    $region2: #{tpu_custom_call.1} parent=1 // pred_check
      _
    $region3: #{tpu_custom_call.1} parent=1 // pred_check_branch
      %16 = sbr.rel (0) target = $region5
    $region4: #{tpu_custom_call.1} parent=1 // pred_region
      %s18 = ssub.s32 128, 128
      %19 = vsyncadd [#allocation3], %s18
      %s21 = sshll.u32 [#allocation2], 4
      %s22 = int_to_ptr.vmem [resolvable:$true] %s21
      %24 = dma.hbm_to_vmem [thread:$0]  %s0, 128, %s22, [#allocation3]
    $region5: #{tpu_custom_call.1} parent=1 // pred_fallthru
      _
    // Predicated region
    $region6: #{tpu_custom_call.1} parent=1 // pred_check
      _
    $region7: #{tpu_custom_call.1} parent=1 // pred_check_branch
      %26 = sbr.rel (0) target = $region9
    $region8: #{tpu_custom_call.1} parent=1 // pred_region
      %s28 = ssub.s32 128, 128
      %29 = vsyncadd [#allocation6], %s28
      %s31 = sshll.u32 [#allocation5], 4
      %s32 = int_to_ptr.vmem [resolvable:$true] %s31
      %34 = dma.hbm_to_vmem [thread:$0]  %s1, 128, %s32, [#allocation6]
    $region9: #{tpu_custom_call.1} parent=1 // pred_fallthru
      _
    // Predicated region
    $region10: #{tpu_custom_call.1} parent=1 // pred_check
      _
    $region11: #{tpu_custom_call.1} parent=1 // pred_check_branch
      %36 = sbr.rel (0) target = $region13
    $region12: #{tpu_custom_call.1} parent=1 // pred_region
      %s38 = ssub.s32 128, 128
      %39 = vsyncadd [#allocation6], %s38
      %s41 = sshll.u32 [#allocation7], 4
      %s42 = int_to_ptr.vmem [resolvable:$true] %s41
      %44 = dma.hbm_to_vmem [thread:$0]  %s2, 128, %s42, [#allocation6]
    $region13: #{tpu_custom_call.1} parent=1 // pred_fallthru
      _
    // Predicated region
    $region14: #{tpu_custom_call.1} parent=1 // pred_check
      _
    $region15: #{tpu_custom_call.1} parent=1 // pred_check_branch
      %46 = sbr.rel (0) target = $region17
    $region16: #{tpu_custom_call.1} parent=1 // pred_region
      %s48 = ssub.s32 64, 64
      %49 = vsyncadd [#allocation9], %s48
      %s51 = sshll.u32 [#allocation8], 4
      %s52 = int_to_ptr.vmem [resolvable:$true] %s51
      %54 = dma.hbm_to_vmem [thread:$0]  %s3, 64, %s52, [#allocation9]
    $region17: #{tpu_custom_call.1} parent=1 // pred_fallthru
      _
    // Predicated region
    $region18: #{tpu_custom_call.1} parent=1 // pred_check
      _
    $region19: #{tpu_custom_call.1} parent=1 // pred_check_branch
      %56 = sbr.rel (0) target = $region21
    $region20: #{tpu_custom_call.1} parent=1 // pred_region
      %s58 = ssub.s32 128, 128
      %59 = vsyncadd [#allocation9], %s58
      %s61 = sshll.u32 [#allocation10], 4
      %s62 = int_to_ptr.vmem [resolvable:$true] %s61
      %64 = dma.hbm_to_vmem [thread:$0]  %s4, 128, %s62, [#allocation9]
    $region21: #{tpu_custom_call.1} parent=1 // pred_fallthru
      _
    // Predicated region
    $region22: #{tpu_custom_call.1} parent=1 // pred_check
      _
    $region23: #{tpu_custom_call.1} parent=1 // pred_check_branch
      %66 = sbr.rel (0) target = $region25
    $region24: #{tpu_custom_call.1} parent=1 // pred_region
      _
    $region25: #{tpu_custom_call.1} parent=1 // pred_fallthru
      _
    // Predicated region
    $region26: #{tpu_custom_call.1} parent=1 // pred_check
      _
    $region27: #{tpu_custom_call.1} parent=1 // pred_check_branch
      %68 = sbr.rel (0) target = $region29
    $region28: #{tpu_custom_call.1} parent=1 // pred_region
      %69 = dma.done [#allocation3], 128
    $region29: #{tpu_custom_call.1} parent=1 // pred_fallthru
      _
    // Predicated region
    $region30: #{tpu_custom_call.1} parent=1 // pred_check
      _
    $region31: #{tpu_custom_call.1} parent=1 // pred_check_branch
      %71 = sbr.rel (0) target = $region33
    $region32: #{tpu_custom_call.1} parent=1 // pred_region
      %72 = dma.done [#allocation6], 128
    $region33: #{tpu_custom_call.1} parent=1 // pred_fallthru
      _
    // Predicated region
    $region34: #{tpu_custom_call.1} parent=1 // pred_check
      _
    $region35: #{tpu_custom_call.1} parent=1 // pred_check_branch
      %74 = sbr.rel (0) target = $region37
    $region36: #{tpu_custom_call.1} parent=1 // pred_region
      %75 = dma.done [#allocation6], 128
    $region37: #{tpu_custom_call.1} parent=1 // pred_fallthru
      _
    // Predicated region
    $region38: #{tpu_custom_call.1} parent=1 // pred_check
      _
    $region39: #{tpu_custom_call.1} parent=1 // pred_check_branch
      %77 = sbr.rel (0) target = $region41
    $region40: #{tpu_custom_call.1} parent=1 // pred_region
      %78 = dma.done [#allocation9], 64
    $region41: #{tpu_custom_call.1} parent=1 // pred_fallthru
      _
    // Predicated region
    $region42: #{tpu_custom_call.1} parent=1 // pred_check
      _
    $region43: #{tpu_custom_call.1} parent=1 // pred_check_branch
      %80 = sbr.rel (0) target = $region45
    $region44: #{tpu_custom_call.1} parent=1 // pred_region
      %81 = dma.done [#allocation9], 128
    $region45: #{tpu_custom_call.1} parent=1 // pred_fallthru
      _
    %v82 = vld [vmem:[#allocation2] sm:$0xff]
    %83 = vst [vmem:[#allocation11] sm:$0xff] %v82
    %v84 = vld [vmem:[#allocation5] sm:$0xff]
    %s85 = scalar_lea.vmem [#allocation11], 8
    %86 = vst [vmem:[%s85] sm:$0xff] %v84
    %v87 = vld [vmem:[#allocation7] sm:$0xff]
    %v88 = vcvt.s32.f32 %v87
    %s89 = scalar_lea.vmem [#allocation11], 16
    %90 = vst [vmem:[%s89] sm:$0xff] %v88
    %v91 = vld [vmem:[#allocation8] sm:$0xf]
    %v92 = vunpack.c.l.bf16 %v91
    %s93 = scalar_lea.vmem [#allocation11], 24
    %94 = vst [vmem:[%s93] sm:$0xff] %v92
    %v95 = vld [vmem:[#allocation10] sm:$0xff]
    %s96 = scalar_lea.vmem [#allocation11], 32
    %97 = vst [vmem:[%s96] sm:$0xff] %v95
    %v98 = vld [vmem:[%s5] sm:$0xff]
    %v99 = vcvt.s32.f32 %v98
    %s100 = scalar_lea.vmem [#allocation11], 40
    %101 = vst [vmem:[%s100] sm:$0xff] %v99
    // Predicated region
    $region46: #{tpu_custom_call.1} parent=1 // pred_check
      _
    $region47: #{tpu_custom_call.1} parent=1 // pred_check_branch
      %103 = sbr.rel (0) target = $region49
    $region48: #{tpu_custom_call.1} parent=1 // pred_region
      %s105 = ssub.s32 768, 768
      %106 = vsyncadd [#allocation4], %s105
      %s107 = sshll.u32 [#allocation11], 4
      %s108 = int_to_ptr.vmem [resolvable:$true] %s107
      %113 = dma.vmem_to_hbm [thread:$0]  %s108, 768, %s6, [#allocation4], 128, 128, 8
    $region49: #{tpu_custom_call.1} parent=1 // pred_fallthru
      _
    // Predicated region
    $region50: #{tpu_custom_call.1} parent=1 // pred_check
      _
    $region51: #{tpu_custom_call.1} parent=1 // pred_check_branch
      %115 = sbr.rel (0) target = $region53
    $region52: #{tpu_custom_call.1} parent=1 // pred_region
      %116 = dma.done [#allocation4], 768
    $region53: #{tpu_custom_call.1} parent=1 // pred_fallthru
      _
    %117 = vsyncpa [#allocation3], 1
    %118 = vsyncpa [#allocation6], 1
    %119 = vsyncpa [#allocation9], 1
    %120 = vsyncpa [#allocation4], 1

</llo_original>
